<compile_context>
chip_gen: v6e
topology: v6e:2x2x1
jax: 0.10.0
libtpu: 0.0.40
codegen_flags: <defaults>
</compile_context>

<pallas_src>
import jax
import jax.numpy as jnp
from jax.experimental import pallas as pl
from jax.experimental.pallas import tpu as pltpu


# ----------------------------------------------------------------------------
# Path A: small vocabulary -> transposed one-hot @ table on the MXU, table
# resident in VMEM.  Everything lane-dense (last dim >= 128):
#   ids tile : (1, TN)  int32
#   one-hot  : (V, TN)  f32   (exact: one nonzero per column)
#   out tile : (D, TN)  f32   (wrapper transposes back once)
# ----------------------------------------------------------------------------
def _onehot_gather_kernel(ids_ref, tab_t_ref, out_ref):
    ids = ids_ref[...]                                        # (1, TN)
    v = tab_t_ref.shape[1]
    tn = ids.shape[1]
    vocab = jax.lax.broadcasted_iota(jnp.int32, (v, tn), 0)   # row = vocab id
    onehot = (vocab == ids).astype(tab_t_ref.dtype)           # (V, TN)
    out_ref[...] = jnp.dot(
        tab_t_ref[...], onehot, preferred_element_type=jnp.float32
    ).astype(out_ref.dtype)


def _forward_onehot(flat_ids, table, tn):
    V, D = table.shape
    n = flat_ids.shape[0]
    # Shrink the tile for small problems but keep it a multiple of 128 so the
    # index and output tiles stay lane-dense.
    tn = min(tn, pl.cdiv(n, 128) * 128)
    n_pad = pl.cdiv(n, tn) * tn
    if n_pad != n:
        flat_ids = jnp.pad(flat_ids, (0, n_pad - n))
    ids2d = flat_ids.reshape(n_pad // tn, tn)
    table_t = table.T                                         # (D, V), once, in XLA

    out_t = pl.pallas_call(
        _onehot_gather_kernel,
        out_shape=jax.ShapeDtypeStruct((D, n_pad), table.dtype),
        grid=(n_pad // tn,),
        in_specs=[
            pl.BlockSpec((1, tn), lambda i: (i, 0)),   # lane-dense index tile
            pl.BlockSpec((D, V), lambda i: (0, 0)),    # resident table (const map)
        ],
        out_specs=pl.BlockSpec((D, tn), lambda i: (0, i)),
        compiler_params=pltpu.CompilerParams(
            dimension_semantics=("parallel",),
            vmem_limit_bytes=32 * 1024 * 1024,
        ),
    )(ids2d, table_t)
    return out_t.T                                            # (n_pad, D)


# ----------------------------------------------------------------------------
# Path B: large vocabulary -> DMA row gather.  Table stays in HBM; the flat
# indices are scalar-prefetched into SMEM and drive data-dependent BlockSpec
# index_maps, so each grid step DMAs exactly ROWS_PER_STEP (1, D) rows.
# ----------------------------------------------------------------------------
def _dma_gather_kernel(ids_ref, *refs):
    # ids_ref: (n_pad,) int32 in SMEM -- only consumed by the index_maps.
    del ids_ref
    out_ref = refs[-1]
    rows = [r[...] for r in refs[:-1]]             # G tiles of shape (1, D)
    out_ref[...] = jnp.concatenate(rows, axis=0)   # one dense (G, D) store


def _forward_dma(flat_ids, table, rows_per_step):
    V, D = table.shape
    g = rows_per_step
    n = flat_ids.shape[0]
    n_pad = pl.cdiv(n, g) * g
    if n_pad != n:
        flat_ids = jnp.pad(flat_ids, (0, n_pad - n))

    grid_spec = pltpu.PrefetchScalarGridSpec(
        num_scalar_prefetch=1,
        grid=(n_pad // g,),
        in_specs=[
            pl.BlockSpec((1, D), (lambda i, ids, gg=gg: (ids[i * g + gg], 0)))
            for gg in range(g)
        ],
        out_specs=pl.BlockSpec((g, D), lambda i, ids: (i, 0)),
    )
    out = pl.pallas_call(
        _dma_gather_kernel,
        out_shape=jax.ShapeDtypeStruct((n_pad, D), table.dtype),
        grid_spec=grid_spec,
        compiler_params=pltpu.CompilerParams(
            dimension_semantics=("parallel",),
            vmem_limit_bytes=32 * 1024 * 1024,
        ),
    )(flat_ids, *([table] * g))
    return out


# ----------------------------------------------------------------------------
# Public wrapper (forward pass of CategoricalCondition).
# ----------------------------------------------------------------------------
def categorical_condition_forward(indices, table, *, tn=512, rows_per_step=16,
                                  method="auto"):
    """Embedding lookup: returns table[indices], shape indices.shape + (D,).

    method: "auto" | "onehot" (small-vocab MXU path) | "dma" (HBM row gather).
    NOTE: for a handful of lookups a plain jnp.take beats any kernel launch;
    this demo always goes through Pallas to exercise the kernels.
    """
    V, D = table.shape
    orig_shape = indices.shape
    # torch.nn.Embedding raises on out-of-range ids; we clamp instead so the
    # data-dependent DMA can never address out of bounds.
    flat = jnp.clip(indices.reshape(-1).astype(jnp.int32), 0, V - 1)
    n = flat.shape[0]

    if method == "auto":
        small_table = (
            V <= 1024 and D <= 512
            and V * D * table.dtype.itemsize <= (2 << 20)
        )
        method = "onehot" if small_table else "dma"

    if method == "onehot":
        out = _forward_onehot(flat, table, tn)
    elif method == "dma":
        out = _forward_dma(flat, table, rows_per_step)
    else:
        raise ValueError(f"unknown method: {method}")

    return out[:n].reshape(*orig_shape, D)


if __name__ == "__main__":
    key = jax.random.PRNGKey(0)
    k1, k2, k3, k4 = jax.random.split(key, 4)

    # --- small config matching the module: nn.Embedding(64, 32) -------------
    n_inputs, n_outputs = 64, 32
    batch, seq = 2, 8
    table = jax.random.normal(k1, (n_inputs, n_outputs), dtype=jnp.float32)
    idx = jax.random.randint(k2, (batch, seq), 0, n_inputs, dtype=jnp.int32)

    out = categorical_condition_forward(idx, table)           # one-hot/MXU path
    out = jax.block_until_ready(out)
    ref = table[idx]
    assert out.shape == (batch, seq, n_outputs)
    assert jnp.allclose(out, ref, atol=1e-6), "one-hot path mismatch"

    # --- larger vocabulary: exercises the scalar-prefetch DMA row gather ----
    V2, D2 = 4096, 128
    table2 = jax.random.normal(k3, (V2, D2), dtype=jnp.float32)
    idx2 = jax.random.randint(k4, (2, 64), 0, V2, dtype=jnp.int32)

    out2 = categorical_condition_forward(idx2, table2, method="dma")
    out2 = jax.block_until_ready(out2)
    ref2 = table2[idx2]
    assert out2.shape == (2, 64, D2)
    assert jnp.allclose(out2, ref2, atol=1e-6), "DMA gather path mismatch"

    print("KERNEL_OK")
</pallas_src>

<mosaic_0001>
module attributes {stable_mosaic.version = 11 : i64} {
  func.func @_onehot_gather_kernel(%arg0: i32, %arg1: memref<1x128xi32, #tpu.memory_space<vmem>>, %arg2: memref<32x64xf32, #tpu.memory_space<vmem>>, %arg3: memref<32x128xf32, #tpu.memory_space<vmem>>) attributes {dimension_semantics = [#tpu.dimension_semantics<parallel>], iteration_bounds = array<i64: 1>, scalar_prefetch = 0 : i64, scratch_operands = 0 : i64, tpu.core_type = #tpu.core_type<tc>, window_params = [{transform_indices = @transform_0, window_bounds = array<i64: 1, 128>}, {pipeline_mode = #tpu.pipeline_mode<synchronous>, transform_indices = @transform_1, window_bounds = array<i64: 32, 64>}, {transform_indices = @transform_2, window_bounds = array<i64: 32, 128>}]} {
    %c0 = arith.constant 0 : index
    %c0_0 = arith.constant 0 : index
    %0 = vector.load %arg1[%c0, %c0_0] : memref<1x128xi32, #tpu.memory_space<vmem>>, vector<1x128xi32>
    %1 = tpu.iota {dimensions = array<i32: 0>} : vector<64x128xi32>
    %2 = vector.broadcast %0 : vector<1x128xi32> to vector<64x128xi32>
    %3 = arith.cmpi eq, %1, %2 : vector<64x128xi32>
    %4 = arith.extui %3 : vector<64x128xi1> to vector<64x128xi32>
    %5 = arith.sitofp %4 : vector<64x128xi32> to vector<64x128xf32>
    %c0_1 = arith.constant 0 : index
    %c0_2 = arith.constant 0 : index
    %6 = vector.load %arg2[%c0_1, %c0_2] : memref<32x64xf32, #tpu.memory_space<vmem>>, vector<32x64xf32>
    %cst = arith.constant dense<0.000000e+00> : vector<32x128xf32>
    %7 = tpu.matmul %6, %5, %cst {dimension_numbers = #tpu.dot_dimension_numbers<[1], [0], [0], [1], [0, 0, 1, 1], [], []>} : vector<32x64xf32>, vector<64x128xf32>, vector<32x128xf32> -> vector<32x128xf32>
    %c0_3 = arith.constant 0 : index
    %c0_4 = arith.constant 0 : index
    %8 = vector.load %arg3[%c0_3, %c0_4] : memref<32x128xf32, #tpu.memory_space<vmem>>, vector<32x128xf32>
    tpu.vector_store %arg3[%c0_3, %c0_4], %7 {strides = array<i32>} : memref<32x128xf32, #tpu.memory_space<vmem>>, vector<32x128xf32>,
    return
  }
  func.func @transform_0(%arg0: i32) -> (i32, i32) {
    %c0_i32 = arith.constant 0 : i32
    %c0_i32_0 = arith.constant 0 : i32
    return %arg0, %c0_i32 : i32, i32
  }
  func.func @transform_1(%arg0: i32) -> (i32, i32) {
    %c0_i32 = arith.constant 0 : i32
    %c0_i32_0 = arith.constant 0 : i32
    %c0_i32_1 = arith.constant 0 : i32
    return %c0_i32, %c0_i32_0 : i32, i32
  }
  func.func @transform_2(%arg0: i32) -> (i32, i32) {
    %c0_i32 = arith.constant 0 : i32
    %c0_i32_0 = arith.constant 0 : i32
    return %c0_i32, %arg0 : i32, i32
  }
}

</mosaic_0001>

<llo_original>
// kernel: tpu_custom_call.1
$region0: #{tpu_custom_call.1}
  #allocation0 [shape = 'u32[]', space=smem, size = 0x4, offset = 0x4, fixed_abs, tag = 'smem constant byte address 0x4 - core index']
  #allocation1 [shape = 'u32[144,128]{1,0:T(1,128)}', space=vmem, size = 0x12000, scoped, tag = 'internal scratch']
  %s0 = inlined_call_operand.hbm [shape: s32[1,128], index: 0, kind: input, shape index: {}]
  %s1 = inlined_call_operand.hbm [shape: f32[32,64], index: 1, kind: input, shape index: {}]
  %s2 = inlined_call_operand.hbm [shape: f32[32,128], index: 2, kind: output, shape index: {}]
  %s3 = sld [smem:[#allocation0]]
  $region26: #{tpu_custom_call.1} parent=0
    _
  %s5 = ssub.s32 1, %s3
  %s6 = scalar_select 0, %s5, %s3
  $region1: #{tpu_custom_call.1} parent=0
    #allocation2 [shape = 'u8[512]{0}', space=vmem, size = 0x400, scoped, tag = 'input window, operand 0, single buffered']
    #allocation3 [shape = 's32[1]{0}', space=sflag, size = 0x4, scoped, tag = 'scoped memory for tpu_custom_call.1']
    #allocation4 [shape = 's32[1]{0}', space=sflag, size = 0x4, scoped, tag = 'scoped memory for tpu_custom_call.1']
    #allocation5 [shape = 'u8[16384]{0}', space=vmem, size = 0x4000, scoped, tag = 'input window, operand 1, single buffered']
    #allocation6 [shape = 's32[1]{0}', space=sflag, size = 0x4, scoped, tag = 'scoped memory for tpu_custom_call.1']
    #allocation7 [shape = 'u8[16384]{0}', space=vmem, size = 0x4000, scoped, tag = 'output window, operand 0, single buffered']
    %7 = vsyncpa [#allocation3], 0
    %8 = vsyncpa [#allocation6], 0
    %9 = vsyncpa [#allocation4], 0
    // Predicated region
    $region2: #{tpu_custom_call.1} parent=1 // pred_check
      _
    $region3: #{tpu_custom_call.1} parent=1 // pred_check_branch
      %11 = sbr.rel (0) target = $region5
    $region4: #{tpu_custom_call.1} parent=1 // pred_region
      %s13 = ssub.s32 16, 16
      %14 = vsyncadd [#allocation3], %s13
      %s16 = sshll.u32 [#allocation2], 4
      %s17 = int_to_ptr.vmem [resolvable:$true] %s16
      %19 = dma.hbm_to_vmem [thread:$0]  %s0, 16, %s17, [#allocation3]
    $region5: #{tpu_custom_call.1} parent=1 // pred_fallthru
      _
    // Predicated region
    $region6: #{tpu_custom_call.1} parent=1 // pred_check
      _
    $region7: #{tpu_custom_call.1} parent=1 // pred_check_branch
      %21 = sbr.rel (0) target = $region9
    $region8: #{tpu_custom_call.1} parent=1 // pred_region
      %s23 = ssub.s32 512, 512
      %24 = vsyncadd [#allocation6], %s23
      %s25 = sshll.u32 [#allocation5], 4
      %s26 = int_to_ptr.vmem [resolvable:$true] %s25
      %31 = dma.hbm_to_vmem [thread:$0]  %s1, 512, %s26, [#allocation6], 128, 128, 8
    $region9: #{tpu_custom_call.1} parent=1 // pred_fallthru
      _
    // Predicated region
    $region10: #{tpu_custom_call.1} parent=1 // pred_check
      _
    $region11: #{tpu_custom_call.1} parent=1 // pred_check_branch
      %33 = sbr.rel (0) target = $region13
    $region12: #{tpu_custom_call.1} parent=1 // pred_region
      %34 = dma.done [#allocation3], 16
    $region13: #{tpu_custom_call.1} parent=1 // pred_fallthru
      _
    // Predicated region
    $region14: #{tpu_custom_call.1} parent=1 // pred_check
      _
    $region15: #{tpu_custom_call.1} parent=1 // pred_check_branch
      %36 = sbr.rel (0) target = $region17
    $region16: #{tpu_custom_call.1} parent=1 // pred_region
      %37 = dma.done [#allocation6], 512
    $region17: #{tpu_custom_call.1} parent=1 // pred_fallthru
      _
    %v38 = vld [vmem:[#allocation2] sm:$0x1]
    %v39 = vlaneseq
    %v40 = vshrl.u32 %v39, 7
    %v41 = vadd.s32 %v40, 8
    %v42 = vadd.s32 %v40, 16
    %v43 = vadd.s32 %v40, 24
    %v44 = vadd.s32 %v40, 32
    %v45 = vadd.s32 %v40, 40
    %v46 = vadd.s32 %v40, 48
    %v47 = vadd.s32 %v40, 56
    %v48 = vlaneseq
    %v49 = vshrl.u32 %v48, 7
    %v50 = vsub.s32 0, %v49
    %v51 = vrot.slane %v38, %v50
    %vm52 = vcmp.eq.s32.totalorder %v40, %v51
    %vm53 = vcmp.eq.s32.totalorder %v41, %v51
    %vm54 = vcmp.eq.s32.totalorder %v42, %v51
    %vm55 = vcmp.eq.s32.totalorder %v43, %v51
    %vm56 = vcmp.eq.s32.totalorder %v44, %v51
    %vm57 = vcmp.eq.s32.totalorder %v45, %v51
    %vm58 = vcmp.eq.s32.totalorder %v46, %v51
    %vm59 = vcmp.eq.s32.totalorder %v47, %v51
    %v60 = vsel %vm52, 1, 0
    %v61 = vsel %vm53, 1, 0
    %v62 = vsel %vm54, 1, 0
    %v63 = vsel %vm55, 1, 0
    %v64 = vsel %vm56, 1, 0
    %v65 = vsel %vm57, 1, 0
    %v66 = vsel %vm58, 1, 0
    %v67 = vsel %vm59, 1, 0
    %v68 = vcvt.s32.f32 %v60
    %v69 = vcvt.s32.f32 %v61
    %v70 = vcvt.s32.f32 %v62
    %v71 = vcvt.s32.f32 %v63
    %v72 = vcvt.s32.f32 %v64
    %v73 = vcvt.s32.f32 %v65
    %v74 = vcvt.s32.f32 %v66
    %v75 = vcvt.s32.f32 %v67
    %v76 = vld [vmem:[#allocation5] sm:$0xff]
    %v77 = vld [vmem:[#allocation5 + $0x8] sm:$0xff]
    %v78 = vld [vmem:[#allocation5 + $0x10] sm:$0xff]
    %v79 = vld [vmem:[#allocation5 + $0x18] sm:$0xff]
    %vm80 = vcmask 523264
    %v82 = vsel %vm80, %v76, 0
    %v85 = vsel %vm80, %v77, 0
    %v88 = vsel %vm80, %v78, 0
    %v91 = vsel %vm80, %v79, 0
    %93 = vmatprep.subr.mxu0 0.0
    %94 = vmatpush1.msra.mxu0 0.0
    %95 = vmatprep.subr.mxu0 0.0
    %96 = vmatpush1.msra.mxu0 0.0
    %97 = vmatprep.subr.mxu0 0.0
    %98 = vmatpush1.msra.mxu0 0.0
    %99 = vmatprep.subr.mxu0 0.0
    %100 = vmatpush1.msra.mxu0 0.0
    %101 = vmatprep.subr.mxu0 0.0
    %102 = vmatpush1.msra.mxu0 0.0
    %103 = vmatprep.subr.mxu0 0.0
    %104 = vmatpush1.msra.mxu0 0.0
    %105 = vmatprep.subr.mxu0 0.0
    %106 = vmatpush1.msra.mxu0 0.0
    %107 = vmatprep.subr.mxu0 0.0
    %108 = vmatpush1.msra.mxu0 0.0
    %109 = vmatprep.subr.mxu0 0.0
    %110 = vmatpush1.msra.mxu0 %v75
    %111 = vmatprep.subr.mxu0 0.0
    %112 = vmatpush1.msra.mxu0 %v74
    %113 = vmatprep.subr.mxu0 0.0
    %114 = vmatpush1.msra.mxu0 %v73
    %115 = vmatprep.subr.mxu0 0.0
    %116 = vmatpush1.msra.mxu0 %v72
    %117 = vmatprep.subr.mxu0 0.0
    %118 = vmatpush1.msra.mxu0 %v71
    %119 = vmatprep.subr.mxu0 0.0
    %120 = vmatpush1.msra.mxu0 %v70
    %121 = vmatprep.subr.mxu0 0.0
    %122 = vmatpush1.msra.mxu0 %v69
    %123 = vmatprep.subr.mxu0 0.0
    %124 = vmatpush1.msra.mxu0 %v68
    %125 = vmatprep.subr.mxu0 0.0
    %126 = vmatpush2.msra.mxu0 0.0
    %127 = vmatprep.subr.mxu0 0.0
    %128 = vmatpush2.msra.mxu0 0.0
    %129 = vmatprep.subr.mxu0 0.0
    %130 = vmatpush2.msra.mxu0 0.0
    %131 = vmatprep.subr.mxu0 0.0
    %132 = vmatpush2.msra.mxu0 0.0
    %133 = vmatprep.subr.mxu0 0.0
    %134 = vmatpush2.msra.mxu0 0.0
    %135 = vmatprep.subr.mxu0 0.0
    %136 = vmatpush2.msra.mxu0 0.0
    %137 = vmatprep.subr.mxu0 0.0
    %138 = vmatpush2.msra.mxu0 0.0
    %139 = vmatprep.subr.mxu0 0.0
    %140 = vmatpush2.msra.mxu0 0.0
    %141 = vmatprep.subr.mxu0 0.0
    %142 = vmatpush2.msra.mxu0 0.0
    %143 = vmatprep.subr.mxu0 0.0
    %144 = vmatpush2.msra.mxu0 0.0
    %145 = vmatprep.subr.mxu0 0.0
    %146 = vmatpush2.msra.mxu0 0.0
    %147 = vmatprep.subr.mxu0 0.0
    %148 = vmatpush2.msra.mxu0 0.0
    %149 = vmatprep.subr.mxu0 0.0
    %150 = vmatpush2.msra.mxu0 0.0
    %151 = vmatprep.subr.mxu0 0.0
    %152 = vmatpush2.msra.mxu0 0.0
    %153 = vmatprep.subr.mxu0 0.0
    %154 = vmatpush2.msra.mxu0 0.0
    %155 = vmatprep.subr.mxu0 0.0
    %156 = vmatpush2.msra.mxu0 0.0
    %157 = vmatprep.mubr.f32.mxu0 0.0
    %158 = vmatmul.mubr.f32.gmra.mxu0 %v82
    %v159 = vpop.f32.mrf.mxu0
    %v160 = vadd.f32 0.0, %v159
    %v161 = vpop.f32.mrf.mxu0
    %162 = vmatprep.mubr.f32.mxu0 0.0
    %163 = vmatmul.mubr.f32.gmra.mxu0 %v85
    %v164 = vpop.f32.mrf.mxu0
    %v165 = vadd.f32 0.0, %v164
    %v166 = vpop.f32.mrf.mxu0
    %167 = vmatprep.mubr.f32.mxu0 0.0
    %168 = vmatmul.mubr.f32.gmra.mxu0 %v88
    %v169 = vpop.f32.mrf.mxu0
    %v170 = vadd.f32 0.0, %v169
    %v171 = vpop.f32.mrf.mxu0
    %172 = vmatprep.mubr.f32.mxu0 0.0
    %173 = vmatmul.mubr.f32.gmra.mxu0 %v91
    %v174 = vpop.f32.mrf.mxu0
    %v175 = vadd.f32 0.0, %v174
    %v176 = vpop.f32.mrf.mxu0
    %177 = vdwg.mxu0
    %178 = vst [vmem:[#allocation7] sm:$0xff] %v160
    %179 = vst [vmem:[#allocation7 + $0x8] sm:$0xff] %v165
    %180 = vst [vmem:[#allocation7 + $0x10] sm:$0xff] %v170
    %181 = vst [vmem:[#allocation7 + $0x18] sm:$0xff] %v175
    // Predicated region
    $region18: #{tpu_custom_call.1} parent=1 // pred_check
      _
    $region19: #{tpu_custom_call.1} parent=1 // pred_check_branch
      %183 = sbr.rel (0) target = $region21
    $region20: #{tpu_custom_call.1} parent=1 // pred_region
      %s185 = ssub.s32 512, 512
      %186 = vsyncadd [#allocation4], %s185
      %s187 = sshll.u32 [#allocation7], 4
      %s188 = int_to_ptr.vmem [resolvable:$true] %s187
      %193 = dma.vmem_to_hbm [thread:$0]  %s188, 512, %s2, [#allocation4], 128, 128, 8
    $region21: #{tpu_custom_call.1} parent=1 // pred_fallthru
      _
    // Predicated region
    $region22: #{tpu_custom_call.1} parent=1 // pred_check
      _
    $region23: #{tpu_custom_call.1} parent=1 // pred_check_branch
      %195 = sbr.rel (0) target = $region25
    $region24: #{tpu_custom_call.1} parent=1 // pred_region
      %196 = dma.done [#allocation4], 512
    $region25: #{tpu_custom_call.1} parent=1 // pred_fallthru
      _
    %197 = vsyncpa [#allocation3], 1
    %198 = vsyncpa [#allocation6], 1
    %199 = vsyncpa [#allocation4], 1

</llo_original>
